<compile_context>
chip_gen: v5e
topology: v5e:2x2
jax: 0.10.0
libtpu: 0.0.40
codegen_flags: <defaults>
</compile_context>

<pallas_src>
import jax
import jax.numpy as jnp
from jax.experimental import pallas as pl
from jax.experimental.pallas import tpu as pltpu

_LANE = 128  # TPU vreg lane width
_SUBLANE = 8  # TPU vreg sublane width


def mlp_kernel(x_ref, w1_ref, b1_ref, w2_ref, b2_ref, o_ref):
    # Cast x to bf16 in-kernel (VPU has plenty of slack; avoids a wrapper pass).
    x = x_ref[...].astype(w1_ref.dtype)
    # fc1: (TILE_B, In) @ (In, Hp) -> f32 accumulate on the MXU
    h = jnp.dot(x, w1_ref[...], preferred_element_type=jnp.float32)
    h = h + b1_ref[...]
    # sigmoid in f32 (EUP exp path; v5e has no bf16 VPU/EUP)
    h = jax.nn.sigmoid(h)
    # fc2: (TILE_B, Hp) @ (Hp, Cp) -> f32 accumulate; lanes stay dense for MXU
    out = jnp.dot(h.astype(w2_ref.dtype), w2_ref[...],
                  preferred_element_type=jnp.float32)
    out = out + b2_ref[...]
    # Store only the real num_classes columns (unpadded HBM writeback).
    C = o_ref.shape[1]
    o_ref[...] = out[:, :C].astype(o_ref.dtype)


def _round_up(n, m):
    return pl.cdiv(n, m) * m


def music_style_transfer(x, w1, b1, w2, b2, *, tile_b=512,
                         compute_dtype=jnp.bfloat16):
    """x: (B, input_size); w1: (input_size, hidden); w2: (hidden, num_classes).

    Biases may be (H,) / (C,) or (1, H) / (1, C). Returns (B, num_classes) f32.
    """
    B, In = x.shape
    H = w1.shape[1]
    C = w2.shape[1]

    Hp = _round_up(H, _LANE)          # lane-dense hidden dim (kernel-internal)
    Cp = _round_up(C, _LANE)          # lane-dense fc2 width (kernel-internal)

    # Batch tile: cap at tile_b, multiple of 8 sublanes, and keep >= 2 grid
    # steps when the batch allows so v7x's two TensorCores both get work.
    tb = min(tile_b, _round_up(B, _SUBLANE))
    if B > _SUBLANE:
        tb = min(tb, max(_SUBLANE, _round_up(pl.cdiv(B, 2), _SUBLANE)))
    grid = (pl.cdiv(B, tb),)          # ragged tail handled by Pallas masking

    # One-time prep of the (tiny) weights: zero-pad feature dims and cast to
    # bf16. Padded hidden columns give sigmoid(0)=0.5 * zero-padded w2 rows
    # -> contribute exactly 0; padded fc2 columns are never stored.
    w1p = jnp.pad(w1, ((0, 0), (0, Hp - H))).astype(compute_dtype)
    b1p = jnp.pad(b1.reshape(1, -1), ((0, 0), (0, Hp - H))).astype(jnp.float32)
    w2p = jnp.pad(w2, ((0, Hp - H), (0, Cp - C))).astype(compute_dtype)
    b2p = jnp.pad(b2.reshape(1, -1), ((0, 0), (0, Cp - C))).astype(jnp.float32)

    wsize = jnp.dtype(compute_dtype).itemsize
    cost = pl.CostEstimate(
        flops=2 * B * (In * Hp + Hp * Cp),
        transcendentals=B * Hp,                        # exp inside sigmoid
        bytes_accessed=(x.size * x.dtype.itemsize      # x streamed as-is (f32)
                        + w1p.size * wsize + w2p.size * wsize
                        + b1p.size * 4 + b2p.size * 4
                        + B * C * 4),                  # unpadded f32 output
    )

    out = pl.pallas_call(
        mlp_kernel,
        out_shape=jax.ShapeDtypeStruct((B, C), jnp.float32),
        grid=grid,
        in_specs=[
            # activations stream, one batch tile per grid step
            pl.BlockSpec((tb, In), lambda i: (i, 0)),
            # weights / biases: same block every step -> stay resident in VMEM
            pl.BlockSpec((In, Hp), lambda i: (0, 0)),
            pl.BlockSpec((1, Hp), lambda i: (0, 0)),
            pl.BlockSpec((Hp, Cp), lambda i: (0, 0)),
            pl.BlockSpec((1, Cp), lambda i: (0, 0)),
        ],
        # last dim C equals the full array dim -> legal, unpadded store
        out_specs=pl.BlockSpec((tb, C), lambda i: (i, 0)),
        compiler_params=pltpu.CompilerParams(
            dimension_semantics=("parallel",)),
        cost_estimate=cost,
    )(x, w1p, b1p, w2p, b2p)

    return out


def init_params(key, input_size, hidden_size, num_classes, dtype=jnp.float32):
    """Deterministic init matching nn.Linear shapes (weights stored transposed)."""
    k1, k2, k3, k4 = jax.random.split(key, 4)
    lim1 = 1.0 / jnp.sqrt(input_size)
    lim2 = 1.0 / jnp.sqrt(hidden_size)
    w1 = jax.random.uniform(k1, (input_size, hidden_size), dtype, -lim1, lim1)
    b1 = jax.random.uniform(k2, (1, hidden_size), dtype, -lim1, lim1)
    w2 = jax.random.uniform(k3, (hidden_size, num_classes), dtype, -lim2, lim2)
    b2 = jax.random.uniform(k4, (1, num_classes), dtype, -lim2, lim2)
    return w1, b1, w2, b2


if __name__ == "__main__":
    input_size, hidden_size, num_classes = 32, 32, 8
    batch = 256  # resolves to tile_b=128 -> 2 grid steps (both v7x cores busy)

    key = jax.random.PRNGKey(0)
    kx, kp = jax.random.split(key)
    x = jax.random.normal(kx, (batch, input_size), jnp.float32)
    w1, b1, w2, b2 = init_params(kp, input_size, hidden_size, num_classes)

    out = music_style_transfer(x, w1, b1, w2, b2)
    out = jax.block_until_ready(out)

    # Reference in plain JAX (f32); bf16 matmuls => loose-ish tolerance.
    ref = jax.nn.sigmoid(x @ w1 + b1) @ w2 + b2
    assert out.shape == (batch, num_classes)
    max_err = float(jnp.max(jnp.abs(out - ref)))
    assert jnp.allclose(out, ref, atol=2e-2, rtol=2e-2), (
        f"mismatch vs reference, max abs err {max_err:.4f}")
    print("KERNEL_OK")
</pallas_src>

<mosaic_0001>
module attributes {stable_mosaic.version = 11 : i64} {
  func.func @mlp_kernel(%arg0: i32, %arg1: memref<128x32xf32, #tpu.memory_space<vmem>>, %arg2: memref<32x128xbf16, #tpu.memory_space<vmem>>, %arg3: memref<1x128xf32, #tpu.memory_space<vmem>>, %arg4: memref<128x128xbf16, #tpu.memory_space<vmem>>, %arg5: memref<1x128xf32, #tpu.memory_space<vmem>>, %arg6: memref<128x8xf32, #tpu.memory_space<vmem>>) attributes {dimension_semantics = [#tpu.dimension_semantics<parallel>], iteration_bounds = array<i64: 2>, scalar_prefetch = 0 : i64, scratch_operands = 0 : i64, tpu.core_type = #tpu.core_type<tc>, window_params = [{transform_indices = @transform_0, window_bounds = array<i64: 128, 32>}, {pipeline_mode = #tpu.pipeline_mode<synchronous>, transform_indices = @transform_1, window_bounds = array<i64: 32, 128>}, {pipeline_mode = #tpu.pipeline_mode<synchronous>, transform_indices = @transform_2, window_bounds = array<i64: 1, 128>}, {pipeline_mode = #tpu.pipeline_mode<synchronous>, transform_indices = @transform_3, window_bounds = array<i64: 128, 128>}, {pipeline_mode = #tpu.pipeline_mode<synchronous>, transform_indices = @transform_4, window_bounds = array<i64: 1, 128>}, {transform_indices = @transform_5, window_bounds = array<i64: 128, 8>}]} {
    %c0 = arith.constant 0 : index
    %c0_0 = arith.constant 0 : index
    %0 = vector.load %arg1[%c0, %c0_0] : memref<128x32xf32, #tpu.memory_space<vmem>>, vector<128x32xf32>
    %1 = arith.truncf %0 : vector<128x32xf32> to vector<128x32xbf16>
    %c0_1 = arith.constant 0 : index
    %c0_2 = arith.constant 0 : index
    %2 = vector.load %arg2[%c0_1, %c0_2] : memref<32x128xbf16, #tpu.memory_space<vmem>>, vector<32x128xbf16>
    %cst = arith.constant dense<0.000000e+00> : vector<128x128xf32>
    %3 = tpu.matmul %1, %2, %cst {dimension_numbers = #tpu.dot_dimension_numbers<[1], [0], [0], [1], [0, 0, 1, 1], [], []>} : vector<128x32xbf16>, vector<32x128xbf16>, vector<128x128xf32> -> vector<128x128xf32>
    %c0_3 = arith.constant 0 : index
    %c0_4 = arith.constant 0 : index
    %4 = vector.load %arg3[%c0_3, %c0_4] : memref<1x128xf32, #tpu.memory_space<vmem>>, vector<1x128xf32>
    %5 = vector.broadcast %4 : vector<1x128xf32> to vector<128x128xf32>
    %6 = arith.addf %3, %5 : vector<128x128xf32>
    %7 = arith.negf %6 : vector<128x128xf32>
    %8 = math.exp %7 : vector<128x128xf32>
    %cst_5 = arith.constant 1.000000e+00 : f32
    %9 = vector.broadcast %cst_5 : f32 to vector<128x128xf32>
    %10 = arith.addf %9, %8 : vector<128x128xf32>
    %11 = arith.divf %9, %10 : vector<128x128xf32>
    %12 = arith.truncf %11 : vector<128x128xf32> to vector<128x128xbf16>
    %c0_6 = arith.constant 0 : index
    %c0_7 = arith.constant 0 : index
    %13 = vector.load %arg4[%c0_6, %c0_7] : memref<128x128xbf16, #tpu.memory_space<vmem>>, vector<128x128xbf16>
    %cst_8 = arith.constant dense<0.000000e+00> : vector<128x128xf32>
    %14 = tpu.matmul %12, %13, %cst_8 {dimension_numbers = #tpu.dot_dimension_numbers<[1], [0], [0], [1], [0, 0, 1, 1], [], []>} : vector<128x128xbf16>, vector<128x128xbf16>, vector<128x128xf32> -> vector<128x128xf32>
    %c0_9 = arith.constant 0 : index
    %c0_10 = arith.constant 0 : index
    %15 = vector.load %arg5[%c0_9, %c0_10] : memref<1x128xf32, #tpu.memory_space<vmem>>, vector<1x128xf32>
    %16 = vector.broadcast %15 : vector<1x128xf32> to vector<128x128xf32>
    %17 = arith.addf %14, %16 : vector<128x128xf32>
    %18 = vector.extract_strided_slice %17 {offsets = [0, 0], sizes = [128, 8], strides = [1, 1]} : vector<128x128xf32> to vector<128x8xf32>
    %c0_11 = arith.constant 0 : index
    %c0_12 = arith.constant 0 : index
    %19 = vector.load %arg6[%c0_11, %c0_12] : memref<128x8xf32, #tpu.memory_space<vmem>>, vector<128x8xf32>
    tpu.vector_store %arg6[%c0_11, %c0_12], %18 {strides = array<i32>} : memref<128x8xf32, #tpu.memory_space<vmem>>, vector<128x8xf32>,
    return
  }
  func.func @transform_0(%arg0: i32) -> (i32, i32) {
    %c0_i32 = arith.constant 0 : i32
    %c0_i32_0 = arith.constant 0 : i32
    return %arg0, %c0_i32 : i32, i32
  }
  func.func @transform_1(%arg0: i32) -> (i32, i32) {
    %c0_i32 = arith.constant 0 : i32
    %c0_i32_0 = arith.constant 0 : i32
    %c0_i32_1 = arith.constant 0 : i32
    return %c0_i32, %c0_i32_0 : i32, i32
  }
  func.func @transform_2(%arg0: i32) -> (i32, i32) {
    %c0_i32 = arith.constant 0 : i32
    %c0_i32_0 = arith.constant 0 : i32
    %c0_i32_1 = arith.constant 0 : i32
    return %c0_i32, %c0_i32_0 : i32, i32
  }
  func.func @transform_3(%arg0: i32) -> (i32, i32) {
    %c0_i32 = arith.constant 0 : i32
    %c0_i32_0 = arith.constant 0 : i32
    %c0_i32_1 = arith.constant 0 : i32
    return %c0_i32, %c0_i32_0 : i32, i32
  }
  func.func @transform_4(%arg0: i32) -> (i32, i32) {
    %c0_i32 = arith.constant 0 : i32
    %c0_i32_0 = arith.constant 0 : i32
    %c0_i32_1 = arith.constant 0 : i32
    return %c0_i32, %c0_i32_0 : i32, i32
  }
  func.func @transform_5(%arg0: i32) -> (i32, i32) {
    %c0_i32 = arith.constant 0 : i32
    %c0_i32_0 = arith.constant 0 : i32
    return %arg0, %c0_i32 : i32, i32
  }
}

</mosaic_0001>

<llo_original>
// kernel: tpu_custom_call.1
$region0: #{tpu_custom_call.1}
  #allocation0 [shape = 'u32[]', space=smem, size = 0x4, offset = 0x4, fixed_abs, tag = 'smem constant byte address 0x4 - core index']
  #allocation1 [shape = 'u32[72,128]{1,0:T(1,128)}', space=vmem, size = 0x9000, scoped, tag = 'internal scratch']
  %s0 = inlined_call_operand.vmem [shape: f32[256,32], index: 0, kind: input, shape index: {}]
  %s1 = inlined_call_operand.vmem [shape: bf16[32,128], index: 1, kind: input, shape index: {}]
  %s2 = inlined_call_operand.vmem [shape: f32[1,128], index: 2, kind: input, shape index: {}]
  %s3 = inlined_call_operand.vmem [shape: bf16[128,128], index: 3, kind: input, shape index: {}]
  %s4 = inlined_call_operand.vmem [shape: f32[1,128], index: 4, kind: input, shape index: {}]
  %s5 = inlined_call_operand.vmem [shape: f32[256,8], index: 5, kind: output, shape index: {}]
  %s6 = sld [smem:[#allocation0]]
  $region53: #{tpu_custom_call.1} parent=0
    _
  %s8 = ssub.s32 1, %s6
  %s9 = scalar_select 0, %s8, %s6
  loop: start=0, step=1, limit=4
  $region2: #{tpu_custom_call.1} parent=0 // loop_pre_header
    _
  $region3: #{tpu_custom_call.1} parent=0 // loop_header
    %s11 = sphi 0, %s15
    %p12 = scmp.ge.s32.totalorder %s11, 4
    %s21 = sphi 0, %s23
    %s24 = sphi 0, %s21
    %s25 = sphi 0, %s24
    %s41 = sphi 0, %s25
    %s45 = sphi 0, %s45
    %s47 = sphi 0, %s45
    %s48 = sphi 0, %s47
    %s62 = sphi 0, %s48
    %s66 = sphi 0, %s66
    %s68 = sphi 0, %s66
    %s69 = sphi 0, %s68
    %s83 = sphi 0, %s69
    %s87 = sphi 0, %s87
    %s89 = sphi 0, %s87
    %s90 = sphi 0, %s89
    %s104 = sphi 0, %s90
    %s108 = sphi 0, %s108
    %s110 = sphi 0, %s108
    %s111 = sphi 0, %s110
    %s125 = sphi 0, %s111
    %s131 = sphi 0, %s133
    %s134 = sphi 0, %s131
    %s135 = sphi 0, %s134
    %s151 = sphi 0, %s135
  $region4: #{tpu_custom_call.1} parent=0 // loop_header_branch
    %14 = sbr.rel (%p12) target = $region8
  $region5: #{tpu_custom_call.1} parent=0 // loop_body
    %s16 = ssub.s32 %s11, 1
    %s17 = ssub.s32 %s11, 2
    %s18 = sadd.s32 %s11, 1
    %s19 = ssub.s32 %s11, %s18
    %p20 = scmp.eq.s32.totalorder %s19, 0
    %s22 = sadd.s32 %s21, 1
    %s23 = scalar_select %p20, %s21, %s22
    %p26 = pneg %p20
    %p27 = scmp.eq.s32.totalorder %s11, 1
    %p28 = por %p26, %p27
    %p29 = scmp.ne.s32.totalorder %s21, %s24
    %p30 = scmp.eq.s32.totalorder %s11, 0
    %p31 = por %p29, %p30
    %p32 = scmp.ne.s32.totalorder %s21, %s24
    %p33 = scmp.eq.s32.totalorder %s16, 1
    %p34 = por %p32, %p33
    %p35 = scmp.ne.s32.totalorder %s24, %s25
    %p36 = scmp.eq.s32.totalorder %s16, 0
    %p37 = por %p35, %p36
    %p38 = scmp.ne.s32.totalorder %s24, %s25
    %p39 = scmp.eq.s32.totalorder %s17, 1
    %p40 = por %p38, %p39
    %p42 = scmp.ne.s32.totalorder %s25, %s41
    %p43 = scmp.eq.s32.totalorder %s17, 0
    %p44 = por %p42, %p43
    %s46 = sadd.s32 %s45, 1
    %p49 = scmp.eq.s32.totalorder %s11, 1
    %p50 = scmp.ne.s32.totalorder %s45, %s47
    %p51 = scmp.eq.s32.totalorder %s11, 0
    %p52 = por %p50, %p51
    %p53 = scmp.ne.s32.totalorder %s45, %s47
    %p54 = scmp.eq.s32.totalorder %s16, 1
    %p55 = por %p53, %p54
    %p56 = scmp.ne.s32.totalorder %s47, %s48
    %p57 = scmp.eq.s32.totalorder %s16, 0
    %p58 = por %p56, %p57
    %p59 = scmp.ne.s32.totalorder %s47, %s48
    %p60 = scmp.eq.s32.totalorder %s17, 1
    %p61 = por %p59, %p60
    %p63 = scmp.ne.s32.totalorder %s48, %s62
    %p64 = scmp.eq.s32.totalorder %s17, 0
    %p65 = por %p63, %p64
    %s67 = sadd.s32 %s66, 1
    %p70 = scmp.eq.s32.totalorder %s11, 1
    %p71 = scmp.ne.s32.totalorder %s66, %s68
    %p72 = scmp.eq.s32.totalorder %s11, 0
    %p73 = por %p71, %p72
    %p74 = scmp.ne.s32.totalorder %s66, %s68
    %p75 = scmp.eq.s32.totalorder %s16, 1
    %p76 = por %p74, %p75
    %p77 = scmp.ne.s32.totalorder %s68, %s69
    %p78 = scmp.eq.s32.totalorder %s16, 0
    %p79 = por %p77, %p78
    %p80 = scmp.ne.s32.totalorder %s68, %s69
    %p81 = scmp.eq.s32.totalorder %s17, 1
    %p82 = por %p80, %p81
    %p84 = scmp.ne.s32.totalorder %s69, %s83
    %p85 = scmp.eq.s32.totalorder %s17, 0
    %p86 = por %p84, %p85
    %s88 = sadd.s32 %s87, 1
    %p91 = scmp.eq.s32.totalorder %s11, 1
    %p92 = scmp.ne.s32.totalorder %s87, %s89
    %p93 = scmp.eq.s32.totalorder %s11, 0
    %p94 = por %p92, %p93
    %p95 = scmp.ne.s32.totalorder %s87, %s89
    %p96 = scmp.eq.s32.totalorder %s16, 1
    %p97 = por %p95, %p96
    %p98 = scmp.ne.s32.totalorder %s89, %s90
    %p99 = scmp.eq.s32.totalorder %s16, 0
    %p100 = por %p98, %p99
    %p101 = scmp.ne.s32.totalorder %s89, %s90
    %p102 = scmp.eq.s32.totalorder %s17, 1
    %p103 = por %p101, %p102
    %p105 = scmp.ne.s32.totalorder %s90, %s104
    %p106 = scmp.eq.s32.totalorder %s17, 0
    %p107 = por %p105, %p106
    %s109 = sadd.s32 %s108, 1
    %p112 = scmp.eq.s32.totalorder %s11, 1
    %p113 = scmp.ne.s32.totalorder %s108, %s110
    %p114 = scmp.eq.s32.totalorder %s11, 0
    %p115 = por %p113, %p114
    %p116 = scmp.ne.s32.totalorder %s108, %s110
    %p117 = scmp.eq.s32.totalorder %s16, 1
    %p118 = por %p116, %p117
    %p119 = scmp.ne.s32.totalorder %s110, %s111
    %p120 = scmp.eq.s32.totalorder %s16, 0
    %p121 = por %p119, %p120
    %p122 = scmp.ne.s32.totalorder %s110, %s111
    %p123 = scmp.eq.s32.totalorder %s17, 1
    %p124 = por %p122, %p123
    %p126 = scmp.ne.s32.totalorder %s111, %s125
    %p127 = scmp.eq.s32.totalorder %s17, 0
    %p128 = por %p126, %p127
    %s129 = ssub.s32 %s11, %s18
    %p130 = scmp.eq.s32.totalorder %s129, 0
    %s132 = sadd.s32 %s131, 1
    %s133 = scalar_select %p130, %s131, %s132
    %p136 = pneg %p130
    %p137 = scmp.eq.s32.totalorder %s11, 1
    %p138 = por %p136, %p137
    %p139 = scmp.ne.s32.totalorder %s131, %s134
    %p140 = scmp.eq.s32.totalorder %s11, 0
    %p141 = por %p139, %p140
    %p142 = scmp.ne.s32.totalorder %s131, %s134
    %p143 = scmp.eq.s32.totalorder %s16, 1
    %p144 = por %p142, %p143
    %p145 = scmp.ne.s32.totalorder %s134, %s135
    %p146 = scmp.eq.s32.totalorder %s16, 0
    %p147 = por %p145, %p146
    %p148 = scmp.ne.s32.totalorder %s134, %s135
    %p149 = scmp.eq.s32.totalorder %s17, 1
    %p150 = por %p148, %p149
    %p152 = scmp.ne.s32.totalorder %s135, %s151
    %p153 = scmp.eq.s32.totalorder %s17, 0
    %p154 = por %p152, %p153
    %p155 = scmp.le.s32.totalorder 1, %s11
    %p156 = scmp.lt.s32.totalorder %s11, 3
    %p157 = pnand %p155, %p156
    %p158 = pneg %p157
    // Predicated region
    $region9: #{tpu_custom_call.1} parent=5 // pred_check
      _
    $region10: #{tpu_custom_call.1} parent=5 // pred_check_branch
      %160 = sbr.rel (%p157) target = $region12
    $region11: #{tpu_custom_call.1} parent=5 // pred_region
      %s161 = ssub.s32 %s11, 1
      // Predicated region
      $region13: #{tpu_custom_call.1} parent=11 // pred_check
        %p162 = pneg %p58
      $region14: #{tpu_custom_call.1} parent=11 // pred_check_branch
        %164 = sbr.rel (%p162) target = $region16
      $region15: #{tpu_custom_call.1} parent=11 // pred_region
        _
      $region16: #{tpu_custom_call.1} parent=11 // pred_fallthru
        _
      // Predicated region
      $region17: #{tpu_custom_call.1} parent=11 // pred_check
        %p165 = pneg %p79
      $region18: #{tpu_custom_call.1} parent=11 // pred_check_branch
        %167 = sbr.rel (%p165) target = $region20
      $region19: #{tpu_custom_call.1} parent=11 // pred_region
        _
      $region20: #{tpu_custom_call.1} parent=11 // pred_fallthru
        _
      // Predicated region
      $region21: #{tpu_custom_call.1} parent=11 // pred_check
        %p168 = pneg %p100
      $region22: #{tpu_custom_call.1} parent=11 // pred_check_branch
        %170 = sbr.rel (%p168) target = $region24
      $region23: #{tpu_custom_call.1} parent=11 // pred_region
        _
      $region24: #{tpu_custom_call.1} parent=11 // pred_fallthru
        _
      // Predicated region
      $region25: #{tpu_custom_call.1} parent=11 // pred_check
        %p171 = pneg %p121
      $region26: #{tpu_custom_call.1} parent=11 // pred_check_branch
        %173 = sbr.rel (%p171) target = $region28
      $region27: #{tpu_custom_call.1} parent=11 // pred_region
        _
      $region28: #{tpu_custom_call.1} parent=11 // pred_fallthru
        _
    $region12: #{tpu_custom_call.1} parent=5 // pred_fallthru
      _
    %p174 = scmp.lt.s32.totalorder %s11, 2
    // Predicated region
    $region29: #{tpu_custom_call.1} parent=5 // pred_check
      %p175 = pneg %p174
    $region30: #{tpu_custom_call.1} parent=5 // pred_check_branch
      %177 = sbr.rel (%p175) target = $region32
    $region31: #{tpu_custom_call.1} parent=5 // pred_region
      // Predicated region
      $region33: #{tpu_custom_call.1} parent=31 // pred_check
        %p178 = pneg %p31
      $region34: #{tpu_custom_call.1} parent=31 // pred_check_branch
        %180 = sbr.rel (%p178) target = $region36
      $region35: #{tpu_custom_call.1} parent=31 // pred_region
        %s181 = smul.u32 16, %s11
        %p182 = scmp.lt.s32.totalorder %s181, 31
        %s183 = scalar_select %p182, %s181, 31
        %s184 = smul.addr %s183, 8
        %s185 = scalar_lea.vmem %s0, %s184
        %s186 = smul.u32 16, %s11
      $region36: #{tpu_custom_call.1} parent=31 // pred_fallthru
        _
    $region32: #{tpu_custom_call.1} parent=5 // pred_fallthru
      _
    %p187 = scmp.le.s32.totalorder 1, %s11
    %p188 = scmp.lt.s32.totalorder %s11, 3
    %p189 = pnand %p187, %p188
    %p190 = pneg %p189
    // Predicated region
    $region37: #{tpu_custom_call.1} parent=5 // pred_check
      _
    $region38: #{tpu_custom_call.1} parent=5 // pred_check_branch
      %192 = sbr.rel (%p189) target = $region40
    $region39: #{tpu_custom_call.1} parent=5 // pred_region
      %s193 = ssub.s32 %s11, 1
      %s194 = smul.u32 16, %s16
      %p195 = scmp.lt.s32.totalorder %s194, 31
      %s196 = scalar_select %p195, %s194, 31
      %s197 = smul.addr %s196, 8
      %s198 = scalar_lea.vmem %s0, %s197
      %p199 = pneg %p37
      %p200 = pneg %p34
      %p201 = pneg %p58
      %p202 = pneg %p55
      %p203 = pneg %p79
      %p204 = pneg %p76
      %p205 = pneg %p100
      %p206 = pneg %p97
      %p207 = pneg %p121
      %p208 = pneg %p118
      %p209 = pneg %p147
      %p210 = pneg %p144
      %s211 = smul.u32 16, %s16
      %p212 = scmp.lt.s32.totalorder %s211, 31
      %s213 = scalar_select %p212, %s211, 31
      %s214 = smul.addr %s213, 8
      %s215 = scalar_lea.vmem %s5, %s214
      %s216 = smul.u32 16, %s16
      %p217 = scmp.lt.s32.totalorder %s216, 31
      %s218 = scalar_select %p217, %s216, 31
      %s219 = smul.addr %s218, 8
      %s220 = scalar_lea.vmem %s0, %s219
      %s221 = smul.u32 16, %s16
      %s222 = smul.u32 16, %s16
      %p223 = scmp.lt.s32.totalorder %s222, 31
      %s224 = scalar_select %p223, %s222, 31
      %s225 = smul.addr %s224, 8
      %s226 = scalar_lea.vmem %s5, %s225
      %s227 = smul.u32 16, %s16
      %v229 = vld [vmem:[%s220] sm:$0xff]
      %v230 = vld [vmem:[%s220 + $0x8] sm:$0xff]
      %v231 = vld [vmem:[%s220 + $0x10] sm:$0xff]
      %v232 = vld [vmem:[%s220 + $0x18] sm:$0xff]
      %v233 = vld [vmem:[%s220 + $0x20] sm:$0xff]
      %v234 = vld [vmem:[%s220 + $0x28] sm:$0xff]
      %v235 = vld [vmem:[%s220 + $0x30] sm:$0xff]
      %v236 = vld [vmem:[%s220 + $0x38] sm:$0xff]
      %v237 = vld [vmem:[%s220 + $0x40] sm:$0xff]
      %v238 = vld [vmem:[%s220 + $0x48] sm:$0xff]
      %v239 = vld [vmem:[%s220 + $0x50] sm:$0xff]
      %v240 = vld [vmem:[%s220 + $0x58] sm:$0xff]
      %v241 = vld [vmem:[%s220 + $0x60] sm:$0xff]
      %v242 = vld [vmem:[%s220 + $0x68] sm:$0xff]
      %v243 = vld [vmem:[%s220 + $0x70] sm:$0xff]
      %v244 = vld [vmem:[%s220 + $0x78] sm:$0xff]
      %v245 = vpack.c.bf16 %v230, %v229
      %v246 = vpack.c.bf16 %v232, %v231
      %v247 = vpack.c.bf16 %v234, %v233
      %v248 = vpack.c.bf16 %v236, %v235
      %v249 = vpack.c.bf16 %v238, %v237
      %v250 = vpack.c.bf16 %v240, %v239
      %v251 = vpack.c.bf16 %v242, %v241
      %v252 = vpack.c.bf16 %v244, %v243
      %v253 = vld [vmem:[%s1] sm:$0xf]
      %v254 = vld [vmem:[%s1 + $0x4] sm:$0xf]
      %v255 = vld [vmem:[%s1 + $0x8] sm:$0xf]
      %v256 = vld [vmem:[%s1 + $0xc] sm:$0xf]
      %v257 = vld [vmem:[%s2] sm:$0x1]
      %v259 = vperm.slane %v257, 0
      %v265 = vunpack.c.l.b16 %v253
      %v266 = vunpack.c.l.b16 %v254
      %v267 = vunpack.c.l.b16 %v255
      %v268 = vunpack.c.l.b16 %v256
      %v269 = vpack.c.b16 %v266, %v265
      %v270 = vpack.c.b16 %v268, %v267
      %vm273 = vcmask 261120
      %v275 = vsel %vm273, %v245, 0
      %v278 = vsel %vm273, %v246, 0
      %v281 = vsel %vm273, %v247, 0
      %v284 = vsel %vm273, %v248, 0
      %v287 = vsel %vm273, %v249, 0
      %v290 = vsel %vm273, %v250, 0
      %v293 = vsel %vm273, %v251, 0
      %v296 = vsel %vm273, %v252, 0
      %298 = vmatpush.bf16.msra.mxu0 0
      %299 = vmatpush.bf16.msra.mxu0 0
      %300 = vmatpush.bf16.msra.mxu0 0
      %301 = vmatpush.bf16.msra.mxu0 0
      %302 = vmatpush.bf16.msra.mxu0 0
      %303 = vmatpush.bf16.msra.mxu0 0
      %304 = vmatpush.bf16.msra.mxu0 %v270
      %305 = vmatpush.bf16.msra.mxu0 %v269
      %306 = vmatmul.bf16.gmra.mxu0 %v275
      %v307 = vpop.f32.mrf.mxu0
      %v308 = vadd.f32 %v259, %v307
      %v309 = vpop.f32.mrf.mxu0
      %v310 = vadd.f32 %v259, %v309
      %311 = vmatmul.bf16.gmra.mxu0 %v278
      %v312 = vpop.f32.mrf.mxu0
      %v313 = vadd.f32 %v259, %v312
      %v314 = vpop.f32.mrf.mxu0
      %v315 = vadd.f32 %v259, %v314
      %316 = vmatmul.bf16.gmra.mxu0 %v281
      %v317 = vpop.f32.mrf.mxu0
      %v318 = vadd.f32 %v259, %v317
      %v319 = vpop.f32.mrf.mxu0
      %v320 = vadd.f32 %v259, %v319
      %321 = vmatmul.bf16.gmra.mxu0 %v284
      %v322 = vpop.f32.mrf.mxu0
      %v323 = vadd.f32 %v259, %v322
      %v324 = vpop.f32.mrf.mxu0
      %v325 = vadd.f32 %v259, %v324
      %326 = vmatmul.bf16.gmra.mxu0 %v287
      %v327 = vpop.f32.mrf.mxu0
      %v328 = vadd.f32 %v259, %v327
      %v329 = vpop.f32.mrf.mxu0
      %v330 = vadd.f32 %v259, %v329
      %331 = vmatmul.bf16.gmra.mxu0 %v290
      %v332 = vpop.f32.mrf.mxu0
      %v333 = vadd.f32 %v259, %v332
      %v334 = vpop.f32.mrf.mxu0
      %v335 = vadd.f32 %v259, %v334
      %336 = vmatmul.bf16.gmra.mxu0 %v293
      %v337 = vpop.f32.mrf.mxu0
      %v338 = vadd.f32 %v259, %v337
      %v339 = vpop.f32.mrf.mxu0
      %v340 = vadd.f32 %v259, %v339
      %341 = vmatmul.bf16.gmra.mxu0 %v296
      %v342 = vpop.f32.mrf.mxu0
      %v343 = vadd.f32 %v259, %v342
      %v344 = vpop.f32.mrf.mxu0
      %v345 = vadd.f32 %v259, %v344
      %346 = vdwg.mxu0
      %v347 = vxor.u32 %v308, 2147483648
      %v348 = vxor.u32 %v310, 2147483648
      %v349 = vxor.u32 %v313, 2147483648
      %v350 = vxor.u32 %v315, 2147483648
      %v351 = vxor.u32 %v318, 2147483648
      %v352 = vxor.u32 %v320, 2147483648
      %v353 = vxor.u32 %v323, 2147483648
      %v354 = vxor.u32 %v325, 2147483648
      %v355 = vxor.u32 %v328, 2147483648
      %v356 = vxor.u32 %v330, 2147483648
      %v357 = vxor.u32 %v333, 2147483648
      %v358 = vxor.u32 %v335, 2147483648
      %v359 = vxor.u32 %v338, 2147483648
      %v360 = vxor.u32 %v340, 2147483648
      %v361 = vxor.u32 %v343, 2147483648
      %v362 = vxor.u32 %v345, 2147483648
      %v363 = vmul.f32 %v347, 1.442695
      %v364 = vpow.pop %v363
      %v365 = vmul.f32 %v348, 1.442695
      %v366 = vpow.pop %v365
      %v367 = vmul.f32 %v349, 1.442695
      %v368 = vpow.pop %v367
      %v369 = vmul.f32 %v350, 1.442695
      %v370 = vpow.pop %v369
      %v371 = vmul.f32 %v351, 1.442695
      %v372 = vpow.pop %v371
      %v373 = vmul.f32 %v352, 1.442695
      %v374 = vpow.pop %v373
      %v375 = vmul.f32 %v353, 1.442695
      %v376 = vpow.pop %v375
      %v377 = vmul.f32 %v354, 1.442695
      %v378 = vpow.pop %v377
      %v379 = vmul.f32 %v355, 1.442695
      %v380 = vpow.pop %v379
      %v381 = vmul.f32 %v356, 1.442695
      %v382 = vpow.pop %v381
      %v383 = vmul.f32 %v357, 1.442695
      %v384 = vpow.pop %v383
      %v385 = vmul.f32 %v358, 1.442695
      %v386 = vpow.pop %v385
      %v387 = vmul.f32 %v359, 1.442695
      %v388 = vpow.pop %v387
      %v389 = vmul.f32 %v360, 1.442695
      %v390 = vpow.pop %v389
      %v391 = vmul.f32 %v361, 1.442695
      %v392 = vpow.pop %v391
      %v393 = vmul.f32 %v362, 1.442695
      %v394 = vpow.pop %v393
      %v395 = vadd.f32 %v364, 1.0
      %v396 = vadd.f32 %v366, 1.0
      %v397 = vadd.f32 %v368, 1.0
      %v398 = vadd.f32 %v370, 1.0
      %v399 = vadd.f32 %v372, 1.0
      %v400 = vadd.f32 %v374, 1.0
      %v401 = vadd.f32 %v376, 1.0
      %v402 = vadd.f32 %v378, 1.0
      %v403 = vadd.f32 %v380, 1.0
      %v404 = vadd.f32 %v382, 1.0
      %v405 = vadd.f32 %v384, 1.0
      %v406 = vadd.f32 %v386, 1.0
      %v407 = vadd.f32 %v388, 1.0
      %v408 = vadd.f32 %v390, 1.0
      %v409 = vadd.f32 %v392, 1.0
      %v410 = vadd.f32 %v394, 1.0
      %v411 = vrcp.pop %v395
      %v412 = vmul.f32 %v395, %v411
      %v413 = vsub.f32 1.0, %v412
      %v414 = vmul.f32 %v411, %v413
      %v415 = vadd.f32 %v411, %v414
      %vm416 = vweird.f32 %v395
      %vm417 = vweird.f32 %v411
      %vm418 = vmor %vm416, %vm417
      %v419 = vsel %vm418, %v411, %v415
      %v420 = vand.u32 2147483647, %v395
      %vm421 = vcmp.eq.f32.partialorder %v420, 8.507059e+37
      %v422 = vand.u32 %v395, 2147483648
      %v423 = vor.u32 1.1754944e-38, %v422
      %v424 = vsel %vm421, %v423, %v419
      %v425 = vmul.f32 1.0, %v424
      %v426 = vrcp.pop %v396
      %v427 = vmul.f32 %v396, %v426
      %v428 = vsub.f32 1.0, %v427
      %v429 = vmul.f32 %v426, %v428
      %v430 = vadd.f32 %v426, %v429
      %vm431 = vweird.f32 %v396
      %vm432 = vweird.f32 %v426
      %vm433 = vmor %vm431, %vm432
      %v434 = vsel %vm433, %v426, %v430
      %v435 = vand.u32 2147483647, %v396
      %vm436 = vcmp.eq.f32.partialorder %v435, 8.507059e+37
      %v437 = vand.u32 %v396, 2147483648
      %v438 = vor.u32 1.1754944e-38, %v437
      %v439 = vsel %vm436, %v438, %v434
      %v440 = vmul.f32 1.0, %v439
      %v441 = vrcp.pop %v397
      %v442 = vmul.f32 %v397, %v441
      %v443 = vsub.f32 1.0, %v442
      %v444 = vmul.f32 %v441, %v443
      %v445 = vadd.f32 %v441, %v444
      %vm446 = vweird.f32 %v397
      %vm447 = vweird.f32 %v441
      %vm448 = vmor %vm446, %vm447
      %v449 = vsel %vm448, %v441, %v445
      %v450 = vand.u32 2147483647, %v397
      %vm451 = vcmp.eq.f32.partialorder %v450, 8.507059e+37
      %v452 = vand.u32 %v397, 2147483648
      %v453 = vor.u32 1.1754944e-38, %v452
      %v454 = vsel %vm451, %v453, %v449
      %v455 = vmul.f32 1.0, %v454
      %v456 = vrcp.pop %v398
      %v457 = vmul.f32 %v398, %v456
      %v458 = vsub.f32 1.0, %v457
      %v459 = vmul.f32 %v456, %v458
      %v460 = vadd.f32 %v456, %v459
      %vm461 = vweird.f32 %v398
      %vm462 = vweird.f32 %v456
      %vm463 = vmor %vm461, %vm462
      %v464 = vsel %vm463, %v456, %v460
      %v465 = vand.u32 2147483647, %v398
      %vm466 = vcmp.eq.f32.partialorder %v465, 8.507059e+37
      %v467 = vand.u32 %v398, 2147483648
      %v468 = vor.u32 1.1754944e-38, %v467
      %v469 = vsel %vm466, %v468, %v464
      %v470 = vmul.f32 1.0, %v469
      %v471 = vrcp.pop %v399
      %v472 = vmul.f32 %v399, %v471
      %v473 = vsub.f32 1.0, %v472
      %v474 = vmul.f32 %v471, %v473
      %v475 = vadd.f32 %v471, %v474
      %vm476 = vweird.f32 %v399
      %vm477 = vweird.f32 %v471
      %vm478 = vmor %vm476, %vm477
      %v479 = vsel %vm478, %v471, %v475
      %v480 = vand.u32 2147483647, %v399
      %vm481 = vcmp.eq.f32.partialorder %v480, 8.507059e+37
      %v482 = vand.u32 %v399, 2147483648
      %v483 = vor.u32 1.1754944e-38, %v482
      %v484 = vsel %vm481, %v483, %v479
      %v485 = vmul.f32 1.0, %v484
      %v486 = vrcp.pop %v400
      %v487 = vmul.f32 %v400, %v486
      %v488 = vsub.f32 1.0, %v487
      %v489 = vmul.f32 %v486, %v488
      %v490 = vadd.f32 %v486, %v489
      %vm491 = vweird.f32 %v400
      %vm492 = vweird.f32 %v486
      %vm493 = vmor %vm491, %vm492
      %v494 = vsel %vm493, %v486, %v490
      %v495 = vand.u32 2147483647, %v400
      %vm496 = vcmp.eq.f32.partialorder %v495, 8.507059e+37
      %v497 = vand.u32 %v400, 2147483648
      %v498 = vor.u32 1.1754944e-38, %v497
      %v499 = vsel %vm496, %v498, %v494
      %v500 = vmul.f32 1.0, %v499
      %v501 = vrcp.pop %v401
      %v502 = vmul.f32 %v401, %v501
      %v503 = vsub.f32 1.0, %v502
      %v504 = vmul.f32 %v501, %v503
      %v505 = vadd.f32 %v501, %v504
      %vm506 = vweird.f32 %v401
      %vm507 = vweird.f32 %v501
      %vm508 = vmor %vm506, %vm507
      %v509 = vsel %vm508, %v501, %v505
      %v510 = vand.u32 2147483647, %v401
      %vm511 = vcmp.eq.f32.partialorder %v510, 8.507059e+37
      %v512 = vand.u32 %v401, 2147483648
      %v513 = vor.u32 1.1754944e-38, %v512
      %v514 = vsel %vm511, %v513, %v509
      %v515 = vmul.f32 1.0, %v514
      %v516 = vrcp.pop %v402
      %v517 = vmul.f32 %v402, %v516
      %v518 = vsub.f32 1.0, %v517
      %v519 = vmul.f32 %v516, %v518
      %v520 = vadd.f32 %v516, %v519
      %vm521 = vweird.f32 %v402
      %vm522 = vweird.f32 %v516
      %vm523 = vmor %vm521, %vm522
      %v524 = vsel %vm523, %v516, %v520
      %v525 = vand.u32 2147483647, %v402
      %vm526 = vcmp.eq.f32.partialorder %v525, 8.507059e+37
      %v527 = vand.u32 %v402, 2147483648
      %v528 = vor.u32 1.1754944e-38, %v527
      %v529 = vsel %vm526, %v528, %v524
      %v530 = vmul.f32 1.0, %v529
      %v531 = vrcp.pop %v403
      %v532 = vmul.f32 %v403, %v531
      %v533 = vsub.f32 1.0, %v532
      %v534 = vmul.f32 %v531, %v533
      %v535 = vadd.f32 %v531, %v534
      %vm536 = vweird.f32 %v403
      %vm537 = vweird.f32 %v531
      %vm538 = vmor %vm536, %vm537
      %v539 = vsel %vm538, %v531, %v535
      %v540 = vand.u32 2147483647, %v403
      %vm541 = vcmp.eq.f32.partialorder %v540, 8.507059e+37
      %v542 = vand.u32 %v403, 2147483648
      %v543 = vor.u32 1.1754944e-38, %v542
      %v544 = vsel %vm541, %v543, %v539
      %v545 = vmul.f32 1.0, %v544
      %v546 = vrcp.pop %v404
      %v547 = vmul.f32 %v404, %v546
      %v548 = vsub.f32 1.0, %v547
      %v549 = vmul.f32 %v546, %v548
      %v550 = vadd.f32 %v546, %v549
      %vm551 = vweird.f32 %v404
      %vm552 = vweird.f32 %v546
      %vm553 = vmor %vm551, %vm552
      %v554 = vsel %vm553, %v546, %v550
      %v555 = vand.u32 2147483647, %v404
      %vm556 = vcmp.eq.f32.partialorder %v555, 8.507059e+37
      %v557 = vand.u32 %v404, 2147483648
      %v558 = vor.u32 1.1754944e-38, %v557
      %v559 = vsel %vm556, %v558, %v554
      %v560 = vmul.f32 1.0, %v559
      %v561 = vrcp.pop %v405
      %v562 = vmul.f32 %v405, %v561
      %v563 = vsub.f32 1.0, %v562
      %v564 = vmul.f32 %v561, %v563
      %v565 = vadd.f32 %v561, %v564
      %vm566 = vweird.f32 %v405
      %vm567 = vweird.f32 %v561
      %vm568 = vmor %vm566, %vm567
      %v569 = vsel %vm568, %v561, %v565
      %v570 = vand.u32 2147483647, %v405
      %vm571 = vcmp.eq.f32.partialorder %v570, 8.507059e+37
      %v572 = vand.u32 %v405, 2147483648
      %v573 = vor.u32 1.1754944e-38, %v572
      %v574 = vsel %vm571, %v573, %v569
      %v575 = vmul.f32 1.0, %v574
      %v576 = vrcp.pop %v406
      %v577 = vmul.f32 %v406, %v576
      %v578 = vsub.f32 1.0, %v577
      %v579 = vmul.f32 %v576, %v578
      %v580 = vadd.f32 %v576, %v579
      %vm581 = vweird.f32 %v406
      %vm582 = vweird.f32 %v576
      %vm583 = vmor %vm581, %vm582
      %v584 = vsel %vm583, %v576, %v580
      %v585 = vand.u32 2147483647, %v406
      %vm586 = vcmp.eq.f32.partialorder %v585, 8.507059e+37
      %v587 = vand.u32 %v406, 2147483648
      %v588 = vor.u32 1.1754944e-38, %v587
      %v589 = vsel %vm586, %v588, %v584
      %v590 = vmul.f32 1.0, %v589
      %v591 = vrcp.pop %v407
      %v592 = vmul.f32 %v407, %v591
      %v593 = vsub.f32 1.0, %v592
      %v594 = vmul.f32 %v591, %v593
      %v595 = vadd.f32 %v591, %v594
      %vm596 = vweird.f32 %v407
      %vm597 = vweird.f32 %v591
      %vm598 = vmor %vm596, %vm597
      %v599 = vsel %vm598, %v591, %v595
      %v600 = vand.u32 2147483647, %v407
      %vm601 = vcmp.eq.f32.partialorder %v600, 8.507059e+37
      %v602 = vand.u32 %v407, 2147483648
      %v603 = vor.u32 1.1754944e-38, %v602
      %v604 = vsel %vm601, %v603, %v599
      %v605 = vmul.f32 1.0, %v604
      %v606 = vrcp.pop %v408
      %v607 = vmul.f32 %v408, %v606
      %v608 = vsub.f32 1.0, %v607
      %v609 = vmul.f32 %v606, %v608
      %v610 = vadd.f32 %v606, %v609
      %vm611 = vweird.f32 %v408
      %vm612 = vweird.f32 %v606
      %vm613 = vmor %vm611, %vm612
      %v614 = vsel %vm613, %v606, %v610
      %v615 = vand.u32 2147483647, %v408
      %vm616 = vcmp.eq.f32.partialorder %v615, 8.507059e+37
      %v617 = vand.u32 %v408, 2147483648
      %v618 = vor.u32 1.1754944e-38, %v617
      %v619 = vsel %vm616, %v618, %v614
      %v620 = vmul.f32 1.0, %v619
      %v621 = vrcp.pop %v409
      %v622 = vmul.f32 %v409, %v621
      %v623 = vsub.f32 1.0, %v622
      %v624 = vmul.f32 %v621, %v623
      %v625 = vadd.f32 %v621, %v624
      %vm626 = vweird.f32 %v409
      %vm627 = vweird.f32 %v621
      %vm628 = vmor %vm626, %vm627
      %v629 = vsel %vm628, %v621, %v625
      %v630 = vand.u32 2147483647, %v409
      %vm631 = vcmp.eq.f32.partialorder %v630, 8.507059e+37
      %v632 = vand.u32 %v409, 2147483648
      %v633 = vor.u32 1.1754944e-38, %v632
      %v634 = vsel %vm631, %v633, %v629
      %v635 = vmul.f32 1.0, %v634
      %v636 = vrcp.pop %v410
      %v637 = vmul.f32 %v410, %v636
      %v638 = vsub.f32 1.0, %v637
      %v639 = vmul.f32 %v636, %v638
      %v640 = vadd.f32 %v636, %v639
      %vm641 = vweird.f32 %v410
      %vm642 = vweird.f32 %v636
      %vm643 = vmor %vm641, %vm642
      %v644 = vsel %vm643, %v636, %v640
      %v645 = vand.u32 2147483647, %v410
      %vm646 = vcmp.eq.f32.partialorder %v645, 8.507059e+37
      %v647 = vand.u32 %v410, 2147483648
      %v648 = vor.u32 1.1754944e-38, %v647
      %v649 = vsel %vm646, %v648, %v644
      %v650 = vmul.f32 1.0, %v649
      %v651 = vpack.c.bf16 %v440, %v425
      %v652 = vpack.c.bf16 %v470, %v455
      %v653 = vpack.c.bf16 %v500, %v485
      %v654 = vpack.c.bf16 %v530, %v515
      %v655 = vpack.c.bf16 %v560, %v545
      %v656 = vpack.c.bf16 %v590, %v575
      %v657 = vpack.c.bf16 %v620, %v605
      %v658 = vpack.c.bf16 %v650, %v635
      %v659 = vld [vmem:[%s3] sm:$0xf]
      %v660 = vld [vmem:[%s3 + $0x4] sm:$0xf]
      %v661 = vld [vmem:[%s3 + $0x8] sm:$0xf]
      %v662 = vld [vmem:[%s3 + $0xc] sm:$0xf]
      %v663 = vld [vmem:[%s3 + $0x10] sm:$0xf]
      %v664 = vld [vmem:[%s3 + $0x14] sm:$0xf]
      %v665 = vld [vmem:[%s3 + $0x18] sm:$0xf]
      %v666 = vld [vmem:[%s3 + $0x1c] sm:$0xf]
      %v667 = vld [vmem:[%s3 + $0x20] sm:$0xf]
      %v668 = vld [vmem:[%s3 + $0x24] sm:$0xf]
      %v669 = vld [vmem:[%s3 + $0x28] sm:$0xf]
      %v670 = vld [vmem:[%s3 + $0x2c] sm:$0xf]
      %v671 = vld [vmem:[%s3 + $0x30] sm:$0xf]
      %v672 = vld [vmem:[%s3 + $0x34] sm:$0xf]
      %v673 = vld [vmem:[%s3 + $0x38] sm:$0xf]
      %v674 = vld [vmem:[%s3 + $0x3c] sm:$0xf]
      %v675 = vld [vmem:[%s4] sm:$0x1]
      %v677 = vperm.slane %v675, 0
      %v695 = vunpack.c.l.b16 %v659
      %v696 = vunpack.c.l.b16 %v660
      %v697 = vunpack.c.l.b16 %v661
      %v698 = vunpack.c.l.b16 %v662
      %v699 = vunpack.c.l.b16 %v663
      %v700 = vunpack.c.l.b16 %v664
      %v701 = vunpack.c.l.b16 %v665
      %v702 = vunpack.c.l.b16 %v666
      %v703 = vunpack.c.l.b16 %v667
      %v704 = vunpack.c.l.b16 %v668
      %v705 = vunpack.c.l.b16 %v669
      %v706 = vunpack.c.l.b16 %v670
      %v707 = vunpack.c.l.b16 %v671
      %v708 = vunpack.c.l.b16 %v672
      %v709 = vunpack.c.l.b16 %v673
      %v710 = vunpack.c.l.b16 %v674
      %v711 = vpack.c.b16 %v696, %v695
      %v712 = vpack.c.b16 %v698, %v697
      %v713 = vpack.c.b16 %v700, %v699
      %v714 = vpack.c.b16 %v702, %v701
      %v715 = vpack.c.b16 %v704, %v703
      %v716 = vpack.c.b16 %v706, %v705
      %v717 = vpack.c.b16 %v708, %v707
      %v718 = vpack.c.b16 %v710, %v709
      %727 = vmatpush.bf16.msra.mxu0 %v718
      %728 = vmatpush.bf16.msra.mxu0 %v717
      %729 = vmatpush.bf16.msra.mxu0 %v716
      %730 = vmatpush.bf16.msra.mxu0 %v715
      %731 = vmatpush.bf16.msra.mxu0 %v714
      %732 = vmatpush.bf16.msra.mxu0 %v713
      %733 = vmatpush.bf16.msra.mxu0 %v712
      %734 = vmatpush.bf16.msra.mxu0 %v711
      %735 = vmatmul.bf16.gmra.mxu0 %v651
      %v736 = vpop.f32.mrf.mxu0
      %v737 = vadd.f32 %v677, %v736
      %v738 = vpop.f32.mrf.mxu0
      %v739 = vadd.f32 %v677, %v738
      %740 = vmatmul.bf16.gmra.mxu0 %v652
      %v741 = vpop.f32.mrf.mxu0
      %v742 = vadd.f32 %v677, %v741
      %v743 = vpop.f32.mrf.mxu0
      %v744 = vadd.f32 %v677, %v743
      %745 = vmatmul.bf16.gmra.mxu0 %v653
      %v746 = vpop.f32.mrf.mxu0
      %v747 = vadd.f32 %v677, %v746
      %v748 = vpop.f32.mrf.mxu0
      %v749 = vadd.f32 %v677, %v748
      %750 = vmatmul.bf16.gmra.mxu0 %v654
      %v751 = vpop.f32.mrf.mxu0
      %v752 = vadd.f32 %v677, %v751
      %v753 = vpop.f32.mrf.mxu0
      %v754 = vadd.f32 %v677, %v753
      %755 = vmatmul.bf16.gmra.mxu0 %v655
      %v756 = vpop.f32.mrf.mxu0
      %v757 = vadd.f32 %v677, %v756
      %v758 = vpop.f32.mrf.mxu0
      %v759 = vadd.f32 %v677, %v758
      %760 = vmatmul.bf16.gmra.mxu0 %v656
      %v761 = vpop.f32.mrf.mxu0
      %v762 = vadd.f32 %v677, %v761
      %v763 = vpop.f32.mrf.mxu0
      %v764 = vadd.f32 %v677, %v763
      %765 = vmatmul.bf16.gmra.mxu0 %v657
      %v766 = vpop.f32.mrf.mxu0
      %v767 = vadd.f32 %v677, %v766
      %v768 = vpop.f32.mrf.mxu0
      %v769 = vadd.f32 %v677, %v768
      %770 = vmatmul.bf16.gmra.mxu0 %v658
      %v771 = vpop.f32.mrf.mxu0
      %v772 = vadd.f32 %v677, %v771
      %v773 = vpop.f32.mrf.mxu0
      %v774 = vadd.f32 %v677, %v773
      %775 = vdwg.mxu0
      %vm776 = vcmask 64512
      %777 = vst.msk [vmem:[%s226] sm:$0xff] %vm776, %v737
      %778 = vst.msk [vmem:[%s226 + $0x8] sm:$0xff] %vm776, %v739
      %779 = vst.msk [vmem:[%s226 + $0x10] sm:$0xff] %vm776, %v742
      %780 = vst.msk [vmem:[%s226 + $0x18] sm:$0xff] %vm776, %v744
      %781 = vst.msk [vmem:[%s226 + $0x20] sm:$0xff] %vm776, %v747
      %782 = vst.msk [vmem:[%s226 + $0x28] sm:$0xff] %vm776, %v749
      %783 = vst.msk [vmem:[%s226 + $0x30] sm:$0xff] %vm776, %v752
      %784 = vst.msk [vmem:[%s226 + $0x38] sm:$0xff] %vm776, %v754
      %785 = vst.msk [vmem:[%s226 + $0x40] sm:$0xff] %vm776, %v757
      %786 = vst.msk [vmem:[%s226 + $0x48] sm:$0xff] %vm776, %v759
      %787 = vst.msk [vmem:[%s226 + $0x50] sm:$0xff] %vm776, %v762
      %788 = vst.msk [vmem:[%s226 + $0x58] sm:$0xff] %vm776, %v764
      %789 = vst.msk [vmem:[%s226 + $0x60] sm:$0xff] %vm776, %v767
      %790 = vst.msk [vmem:[%s226 + $0x68] sm:$0xff] %vm776, %v769
      %791 = vst.msk [vmem:[%s226 + $0x70] sm:$0xff] %vm776, %v772
      %792 = vst.msk [vmem:[%s226 + $0x78] sm:$0xff] %vm776, %v774
      %s793 = smul.u32 16, %s16
      %p794 = scmp.lt.s32.totalorder %s793, 31
      %s795 = scalar_select %p794, %s793, 31
      %s796 = smul.addr %s795, 8
      %s797 = scalar_lea.vmem %s5, %s796
      // Predicated region
      $region41: #{tpu_custom_call.1} parent=39 // pred_check
        %p798 = pneg %p144
      $region42: #{tpu_custom_call.1} parent=39 // pred_check_branch
        %800 = sbr.rel (%p798) target = $region44
      $region43: #{tpu_custom_call.1} parent=39 // pred_region
        %s801 = smul.u32 16, %s16
      $region44: #{tpu_custom_call.1} parent=39 // pred_fallthru
        _
    $region40: #{tpu_custom_call.1} parent=5 // pred_fallthru
      _
    %p802 = scmp.le.s32.totalorder 2, %s11
    // Predicated region
    $region45: #{tpu_custom_call.1} parent=5 // pred_check
      %p803 = pneg %p802
    $region46: #{tpu_custom_call.1} parent=5 // pred_check_branch
      %805 = sbr.rel (%p803) target = $region48
    $region47: #{tpu_custom_call.1} parent=5 // pred_region
      %s806 = ssub.s32 %s11, 2
      // Predicated region
      $region49: #{tpu_custom_call.1} parent=47 // pred_check
        %p807 = pneg %p150
      $region50: #{tpu_custom_call.1} parent=47 // pred_check_branch
        %809 = sbr.rel (%p807) target = $region52
      $region51: #{tpu_custom_call.1} parent=47 // pred_region
        %s810 = smul.u32 16, %s17
        %p811 = scmp.lt.s32.totalorder %s810, 31
        %s812 = scalar_select %p811, %s810, 31
        %s813 = smul.addr %s812, 8
        %s814 = scalar_lea.vmem %s5, %s813
      $region52: #{tpu_custom_call.1} parent=47 // pred_fallthru
        _
    $region48: #{tpu_custom_call.1} parent=5 // pred_fallthru
      _
  $region6: #{tpu_custom_call.1} parent=0 // loop_footer
    %s15 = sadd.s32 1, %s11
  $region7: #{tpu_custom_call.1} parent=0 // loop_footer_branch
    %10 = sbr.rel target = $region3
  $region8: #{tpu_custom_call.1} parent=0 // loop_exit
    _

</llo_original>
